<compile_context>
chip_gen: v7x
topology: tpu7x:2x2x1
jax: 0.10.0
libtpu: 0.0.40
codegen_flags: <defaults>
</compile_context>

<pallas_src>
import jax
import jax.numpy as jnp
from jax.experimental import pallas as pl
from jax.experimental.pallas import tpu as pltpu

KS = 3            # spatial-attention kernel_size
PAD = KS // 2     # padding = kernel_size // 2
HALO_ROWS = 8     # sublane-aligned halo block height


# ---------------------------------------------------------------------------
# Pass 1: channel-attention scale  s = sigmoid(MLP(avgpool(x)) + MLP(maxpool(x)))
# ---------------------------------------------------------------------------
def _make_channel_scale_kernel(C, H, W, TH):
    HW = H * W

    def kernel(x_ref, w1t_ref, b1_ref, w2_ref, b2_ref, s_ref, sum_sc, max_sc):
        t = pl.program_id(1)

        @pl.when(t == 0)
        def _():
            sum_sc[...] = jnp.zeros_like(sum_sc)
            max_sc[...] = jnp.full_like(max_sc, -jnp.inf)

        x_tile = x_ref[0]                                              # (C, TH*W)
        sum_sc[...] += jnp.sum(x_tile, axis=-1, keepdims=True, dtype=jnp.float32)
        max_sc[...] = jnp.maximum(
            max_sc[...], jnp.max(x_tile, axis=-1, keepdims=True).astype(jnp.float32))

        @pl.when(t == pl.num_programs(1) - 1)
        def _():
            w1t = w1t_ref[...]        # (C, Ch)  fc1 weight (transposed)
            b1 = b1_ref[...]          # (1, Ch)
            w2 = w2_ref[...]          # (C, Ch)  fc2 weight
            b2 = b2_ref[...]          # (C, 1)

            def mlp(v):               # v: (C, 1) pooled column vector
                h = jnp.sum(w1t * v, axis=0, keepdims=True) + b1        # (1, Ch)
                h = jnp.maximum(h, 0.0)
                return jnp.sum(w2 * h, axis=1, keepdims=True) + b2      # (C, 1)

            avg = sum_sc[...] * (1.0 / float(HW))
            s_ref[0] = jax.nn.sigmoid(mlp(avg) + mlp(max_sc[...]))      # (C, 1)

    return kernel


# ---------------------------------------------------------------------------
# Pass 2: spatial attention fused with the channel scale
# ---------------------------------------------------------------------------
def _make_spatial_attention_kernel(C, H, W, TH):
    BLK = TH * W  # flat (lane) extent of one spatial tile

    def kernel(w_ref, s_ref, x_ref, prev_ref, next_ref, o_ref):
        # ---- hoisted scalar conv weights: each SMEM scalar read exactly once ----
        wa = [[w_ref[kh * KS + kw] for kw in range(KS)] for kh in range(KS)]            # avg chan
        wm = [[w_ref[KS * KS + kh * KS + kw] for kw in range(KS)] for kh in range(KS)]  # max chan
        bias = w_ref[2 * KS * KS]

        t = pl.program_id(1)

        # Channel-attention scale for this batch element; fused here so the
        # channel-attended feature map never round-trips through HBM.
        s = s_ref[0]                                                     # (C, 1) f32
        x_raw = x_ref[0]                                                 # (C, BLK)
        s_cast = s.astype(x_raw.dtype)
        x_tile = x_raw * s_cast                                          # channel-attended tile

        a = jnp.mean(x_tile, axis=0, keepdims=True, dtype=jnp.float32)   # (1, BLK)
        m = jnp.max(x_tile, axis=0, keepdims=True).astype(jnp.float32)   # (1, BLK)

        # Halo rows (one image row above / below the tile), channel-scaled too.
        prev_row = prev_ref[0][:, HALO_ROWS - 1, :] * s_cast             # (C, W)
        next_row = next_ref[0][:, 0, :] * s_cast                         # (C, W)
        pa = jnp.mean(prev_row, axis=0, keepdims=True, dtype=jnp.float32)
        pm = jnp.max(prev_row, axis=0, keepdims=True).astype(jnp.float32)
        na = jnp.mean(next_row, axis=0, keepdims=True, dtype=jnp.float32)
        nm = jnp.max(next_row, axis=0, keepdims=True).astype(jnp.float32)

        # Place halo rows at the first / last row's lanes (tiny 1-sublane pad).
        zpad = jnp.zeros((1, BLK - W), jnp.float32)
        pa_full = jnp.concatenate([pa, zpad], axis=1)
        pm_full = jnp.concatenate([pm, zpad], axis=1)
        na_full = jnp.concatenate([zpad, na], axis=1)
        nm_full = jnp.concatenate([zpad, nm], axis=1)

        # Lane-index based edge masks (replace zero-padding of the feature map).
        idx = jax.lax.broadcasted_iota(jnp.int32, (1, BLK), 1)
        w_idx = idx % W
        h_loc = idx // W
        h_abs = t * TH + h_loc
        col_l = w_idx >= 1            # left tap inside the image
        col_r = w_idx <= W - 2        # right tap inside the image
        row_u = h_abs >= 1            # up tap inside the image
        row_d = h_abs <= H - 2        # down tap inside the image
        first = h_loc == 0            # first row of this tile  -> use prev halo
        last = h_loc == TH - 1        # last row of this tile   -> use next halo

        # Row-shifted (dh = -1 / +1) avg & max maps; tile-boundary rows come
        # from the halo blocks (the wrapped roll values there are replaced).
        a_up = jnp.where(first, pa_full, pltpu.roll(a, W, axis=1))
        m_up = jnp.where(first, pm_full, pltpu.roll(m, W, axis=1))
        a_dn = jnp.where(last, na_full, pltpu.roll(a, BLK - W, axis=1))
        m_dn = jnp.where(last, nm_full, pltpu.roll(m, BLK - W, axis=1))

        def band(av, mv, ka, km):
            # One conv row-band: left/center/right taps for both channels.
            a_l = jnp.where(col_l, pltpu.roll(av, 1, axis=1), 0.0)
            a_r = jnp.where(col_r, pltpu.roll(av, BLK - 1, axis=1), 0.0)
            m_l = jnp.where(col_l, pltpu.roll(mv, 1, axis=1), 0.0)
            m_r = jnp.where(col_r, pltpu.roll(mv, BLK - 1, axis=1), 0.0)
            return (ka[0] * a_l + ka[1] * av + ka[2] * a_r +
                    km[0] * m_l + km[1] * mv + km[2] * m_r)

        conv = bias + band(a, m, wa[1], wm[1])                               # kh = 1 (center)
        conv = conv + jnp.where(row_u, band(a_up, m_up, wa[0], wm[0]), 0.0)  # kh = 0 (up)
        conv = conv + jnp.where(row_d, band(a_dn, m_dn, wa[2], wm[2]), 0.0)  # kh = 2 (down)

        attn = jax.nn.sigmoid(conv)                                          # (1, BLK) f32
        o_ref[0] = x_tile * attn.astype(x_tile.dtype)

    return kernel


def _pick_block_rows(C, H, W, itemsize, target_bytes=2 << 20):
    """Largest row-tile TH that divides H, is sublane/lane friendly and fits the budget."""
    cands = {H}
    for th in range(8, H, 8):
        if H % th == 0 and (th * W) % 128 == 0:
            cands.add(th)
    cands = sorted(cands)
    fitting = [th for th in cands if C * th * W * itemsize <= target_bytes]
    return max(fitting) if fitting else cands[0]


def cbam(x, fc1_w, fc1_b, fc2_w, fc2_b, conv_weight, conv_bias, *, block_rows=None):
    """CBAM forward: spatial_attention(channel_attention(x)).

    x: (B, C, H, W); fc1_w: (C//r, C, 1, 1); fc1_b: (C//r,);
    fc2_w: (C, C//r, 1, 1); fc2_b: (C,); conv_weight: (1, 2, KS, KS); conv_bias: (1,)
    """
    B, C, H, W = x.shape
    Ch = fc1_w.shape[0]
    assert H % HALO_ROWS == 0, "H must be a multiple of 8"
    itemsize = jnp.dtype(x.dtype).itemsize

    TH = block_rows if block_rows is not None else _pick_block_rows(C, H, W, itemsize)
    assert H % TH == 0 and (TH % HALO_ROWS == 0 or TH == H)
    BLK = TH * W
    assert BLK % 128 == 0 or TH == H, "spatial tile must be lane-dense"
    NT = H // TH
    HB = HALO_ROWS

    # Parameter packing (f32).
    w1t = fc1_w.reshape(Ch, C).T.astype(jnp.float32)     # (C, Ch)
    b1 = fc1_b.reshape(1, Ch).astype(jnp.float32)        # (1, Ch)
    w2 = fc2_w.reshape(C, Ch).astype(jnp.float32)        # (C, Ch)
    b2 = fc2_b.reshape(C, 1).astype(jnp.float32)         # (C, 1)
    w_flat = jnp.concatenate(
        [conv_weight.reshape(-1), conv_bias.reshape(-1)]).astype(jnp.float32)

    # Fold spatial dims -> lane-dense trailing axis (free in HBM).
    x_flat = x.reshape(B, C, H * W)

    block_bytes = C * BLK * itemsize
    halo_bytes = C * HB * W * itemsize
    vmem_limit = int(min(max(4 * block_bytes + 4 * halo_bytes + (4 << 20), 16 << 20),
                         48 << 20))

    # ---- Pass 1: per-(batch, channel) attention scale -----------------------
    s = pl.pallas_call(
        _make_channel_scale_kernel(C, H, W, TH),
        out_shape=jax.ShapeDtypeStruct((B, C, 1), jnp.float32),
        grid=(B, NT),
        in_specs=[
            pl.BlockSpec((1, C, BLK), lambda b, t: (b, 0, t)),   # lane-dense x tile
            pl.BlockSpec((C, Ch), lambda b, t: (0, 0)),          # fc1 weight (transposed)
            pl.BlockSpec((1, Ch), lambda b, t: (0, 0)),          # fc1 bias
            pl.BlockSpec((C, Ch), lambda b, t: (0, 0)),          # fc2 weight
            pl.BlockSpec((C, 1), lambda b, t: (0, 0)),           # fc2 bias
        ],
        out_specs=pl.BlockSpec((1, C, 1), lambda b, t: (b, 0, 0)),
        scratch_shapes=[pltpu.VMEM((C, 1), jnp.float32),         # running sum
                        pltpu.VMEM((C, 1), jnp.float32)],        # running max
        compiler_params=pltpu.CompilerParams(
            dimension_semantics=("parallel", "arbitrary"),
            vmem_limit_bytes=vmem_limit,
        ),
    )(x_flat, w1t, b1, w2, b2)

    # ---- Pass 2: fused channel-scale + spatial attention ---------------------
    def prev_map(b, t):  # 8-row block whose LAST row is image row t*TH - 1 (clamped)
        return (b, 0, jnp.maximum(t * (TH // HB) - 1, 0), 0)

    def next_map(b, t):  # 8-row block whose FIRST row is image row (t+1)*TH (clamped)
        return (b, 0, jnp.minimum((t + 1) * (TH // HB), H // HB - 1), 0)

    out_flat = pl.pallas_call(
        _make_spatial_attention_kernel(C, H, W, TH),
        out_shape=jax.ShapeDtypeStruct((B, C, H * W), x.dtype),
        grid=(B, NT),
        in_specs=[
            pl.BlockSpec(memory_space=pltpu.MemorySpace.SMEM),            # conv weights + bias
            pl.BlockSpec((1, C, 1), lambda b, t: (b, 0, 0)),              # channel scale
            pl.BlockSpec((1, C, BLK), lambda b, t: (b, 0, t)),            # main tile (flat layout)
            pl.BlockSpec((1, C, HB, W), prev_map),                        # halo: row above
            pl.BlockSpec((1, C, HB, W), next_map),                        # halo: row below
        ],
        out_specs=pl.BlockSpec((1, C, BLK), lambda b, t: (b, 0, t)),      # lane-dense output
        compiler_params=pltpu.CompilerParams(
            dimension_semantics=("parallel", "parallel"),
            vmem_limit_bytes=vmem_limit,
        ),
    )(w_flat, s, x_flat, x, x)

    return out_flat.reshape(B, C, H, W)


def _reference(x, fc1_w, fc1_b, fc2_w, fc2_b, conv_weight, conv_bias):
    """Pure-JAX reference matching the PyTorch CBAM forward."""
    B, C, H, W = x.shape
    Ch = fc1_w.shape[0]
    w1 = fc1_w.reshape(Ch, C)
    w2 = fc2_w.reshape(C, Ch)

    avg = jnp.mean(x, axis=(2, 3))                                    # (B, C)
    mx = jnp.max(x, axis=(2, 3))                                      # (B, C)

    def mlp(v):
        h = jax.nn.relu(v @ w1.T + fc1_b.reshape(1, Ch))
        return h @ w2.T + fc2_b.reshape(1, C)

    s = jax.nn.sigmoid(mlp(avg) + mlp(mx))                            # (B, C)
    x_ca = x * s[:, :, None, None]

    avg_out = jnp.mean(x_ca, axis=1, keepdims=True)
    max_out = jnp.max(x_ca, axis=1, keepdims=True)
    x_cat = jnp.concatenate([avg_out, max_out], axis=1)               # (B, 2, H, W)
    out = jax.lax.conv_general_dilated(
        x_cat, conv_weight,
        window_strides=(1, 1), padding=((PAD, PAD), (PAD, PAD)),
        dimension_numbers=("NCHW", "OIHW", "NCHW"),
        precision=jax.lax.Precision.HIGHEST,
    ) + conv_bias.reshape(1, 1, 1, 1)
    return jax.nn.sigmoid(out) * x_ca


if __name__ == "__main__":
    key = jax.random.PRNGKey(0)
    kx, k1, k2, k3, k4, kw, kb = jax.random.split(key, 7)

    B, C, H, W = 2, 64, 16, 16
    RED = 16
    Ch = C // RED
    x = jax.random.normal(kx, (B, C, H, W), dtype=jnp.float32)

    # ChannelAttention MLP params (1x1 convs, PyTorch-default-style uniform init).
    bound1 = 1.0 / (C ** 0.5)
    fc1_w = jax.random.uniform(k1, (Ch, C, 1, 1), minval=-bound1, maxval=bound1,
                               dtype=jnp.float32)
    fc1_b = jax.random.uniform(k2, (Ch,), minval=-bound1, maxval=bound1,
                               dtype=jnp.float32)
    bound2 = 1.0 / (Ch ** 0.5)
    fc2_w = jax.random.uniform(k3, (C, Ch, 1, 1), minval=-bound2, maxval=bound2,
                               dtype=jnp.float32)
    fc2_b = jax.random.uniform(k4, (C,), minval=-bound2, maxval=bound2,
                               dtype=jnp.float32)

    # SpatialAttention conv params (Conv2d(2, 1, 3, padding=1)).
    fan_in = 2 * KS * KS
    bound = 1.0 / (fan_in ** 0.5)
    conv_weight = jax.random.uniform(kw, (1, 2, KS, KS), minval=-bound, maxval=bound,
                                     dtype=jnp.float32)
    conv_bias = jax.random.uniform(kb, (1,), minval=-bound, maxval=bound,
                                   dtype=jnp.float32)

    ref = _reference(x, fc1_w, fc1_b, fc2_w, fc2_b, conv_weight, conv_bias)

    # Default config (auto tile size -> whole slab for this small shape).
    out = jax.block_until_ready(
        cbam(x, fc1_w, fc1_b, fc2_w, fc2_b, conv_weight, conv_bias))
    assert out.shape == (B, C, H, W)
    assert jnp.allclose(out, ref, atol=1e-5, rtol=1e-5), "mismatch vs reference"

    # Also exercise the spatially tiled halo / accumulation path (2 row-tiles).
    out_tiled = jax.block_until_ready(
        cbam(x, fc1_w, fc1_b, fc2_w, fc2_b, conv_weight, conv_bias, block_rows=8))
    assert jnp.allclose(out_tiled, ref, atol=1e-5, rtol=1e-5), "tiled path mismatch"

    print("KERNEL_OK")
</pallas_src>

<mosaic_0001>
module attributes {stable_mosaic.version = 11 : i64} {
  func.func @kernel(%arg0: i32, %arg1: i32, %arg2: memref<1x64x256xf32, #tpu.memory_space<vmem>>, %arg3: memref<64x4xf32, #tpu.memory_space<vmem>>, %arg4: memref<1x4xf32, #tpu.memory_space<vmem>>, %arg5: memref<64x4xf32, #tpu.memory_space<vmem>>, %arg6: memref<64x1xf32, #tpu.memory_space<vmem>>, %arg7: memref<1x64x1xf32, #tpu.memory_space<vmem>>, %arg8: memref<64x1xf32, #tpu.memory_space<vmem>>, %arg9: memref<64x1xf32, #tpu.memory_space<vmem>>) attributes {dimension_semantics = [#tpu.dimension_semantics<parallel>, #tpu.dimension_semantics<arbitrary>], iteration_bounds = array<i64: 2, 1>, scalar_prefetch = 0 : i64, scratch_operands = 2 : i64, tpu.core_type = #tpu.core_type<tc>, window_params = [{transform_indices = @transform_0, window_bounds = array<i64: 1, 64, 256>}, {pipeline_mode = #tpu.pipeline_mode<synchronous>, transform_indices = @transform_1, window_bounds = array<i64: 64, 4>}, {pipeline_mode = #tpu.pipeline_mode<synchronous>, transform_indices = @transform_2, window_bounds = array<i64: 1, 4>}, {pipeline_mode = #tpu.pipeline_mode<synchronous>, transform_indices = @transform_3, window_bounds = array<i64: 64, 4>}, {pipeline_mode = #tpu.pipeline_mode<synchronous>, transform_indices = @transform_4, window_bounds = array<i64: 64, 1>}, {transform_indices = @transform_5, window_bounds = array<i64: 1, 64, 1>}]} {
    %c0_i32 = arith.constant 0 : i32
    %0 = arith.cmpi eq, %arg1, %c0_i32 : i32
    %1 = arith.extui %0 : i1 to i32
    %c0_i32_0 = arith.constant 0 : i32
    %2 = arith.cmpi ne, %1, %c0_i32_0 : i32
    scf.if %2 {
      %cst_14 = arith.constant 0.000000e+00 : f32
      %18 = vector.broadcast %cst_14 : f32 to vector<64x1xf32>
      %c0_15 = arith.constant 0 : index
      %c0_16 = arith.constant 0 : index
      %19 = vector.load %arg8[%c0_15, %c0_16] : memref<64x1xf32, #tpu.memory_space<vmem>>, vector<64x1xf32>
      tpu.vector_store %arg8[%c0_15, %c0_16], %18 {strides = array<i32>} : memref<64x1xf32, #tpu.memory_space<vmem>>, vector<64x1xf32>,
      %cst_17 = arith.constant 0xFF800000 : f32
      %20 = vector.broadcast %cst_17 : f32 to vector<64x1xf32>
      %c0_18 = arith.constant 0 : index
      %c0_19 = arith.constant 0 : index
      %21 = vector.load %arg9[%c0_18, %c0_19] : memref<64x1xf32, #tpu.memory_space<vmem>>, vector<64x1xf32>
      tpu.vector_store %arg9[%c0_18, %c0_19], %20 {strides = array<i32>} : memref<64x1xf32, #tpu.memory_space<vmem>>, vector<64x1xf32>,
    } else {
    }
    %c0 = arith.constant 0 : index
    %c0_1 = arith.constant 0 : index
    %c0_2 = arith.constant 0 : index
    %3 = vector.load %arg2[%c0, %c0_1, %c0_2] : memref<1x64x256xf32, #tpu.memory_space<vmem>>, vector<1x64x256xf32>
    %4 = vector.shape_cast %3 : vector<1x64x256xf32> to vector<64x256xf32>
    %c0_3 = arith.constant 0 : index
    %c0_4 = arith.constant 0 : index
    %5 = vector.load %arg8[%c0_3, %c0_4] : memref<64x1xf32, #tpu.memory_space<vmem>>, vector<64x1xf32>
    %cst = arith.constant dense<0.000000e+00> : vector<64xf32>
    %6 = vector.multi_reduction <add>, %4, %cst [1] : vector<64x256xf32> to vector<64xf32>
    %7 = vector.shape_cast %6 : vector<64xf32> to vector<64x1xf32>
    %8 = arith.addf %5, %7 : vector<64x1xf32>
    %c0_5 = arith.constant 0 : index
    %c0_6 = arith.constant 0 : index
    %9 = vector.load %arg8[%c0_5, %c0_6] : memref<64x1xf32, #tpu.memory_space<vmem>>, vector<64x1xf32>
    tpu.vector_store %arg8[%c0_5, %c0_6], %8 {strides = array<i32>} : memref<64x1xf32, #tpu.memory_space<vmem>>, vector<64x1xf32>,
    %c0_7 = arith.constant 0 : index
    %c0_8 = arith.constant 0 : index
    %10 = vector.load %arg9[%c0_7, %c0_8] : memref<64x1xf32, #tpu.memory_space<vmem>>, vector<64x1xf32>
    %cst_9 = arith.constant dense<0xFF800000> : vector<64xf32>
    %11 = vector.multi_reduction <maximumf>, %4, %cst_9 [1] : vector<64x256xf32> to vector<64xf32>
    %12 = vector.shape_cast %11 : vector<64xf32> to vector<64x1xf32>
    %13 = arith.maximumf %10, %12 : vector<64x1xf32>
    %c0_10 = arith.constant 0 : index
    %c0_11 = arith.constant 0 : index
    %14 = vector.load %arg9[%c0_10, %c0_11] : memref<64x1xf32, #tpu.memory_space<vmem>>, vector<64x1xf32>
    tpu.vector_store %arg9[%c0_10, %c0_11], %13 {strides = array<i32>} : memref<64x1xf32, #tpu.memory_space<vmem>>, vector<64x1xf32>,
    %c0_i32_12 = arith.constant 0 : i32
    %15 = arith.cmpi eq, %arg1, %c0_i32_12 : i32
    %16 = arith.extui %15 : i1 to i32
    %c0_i32_13 = arith.constant 0 : i32
    %17 = arith.cmpi ne, %16, %c0_i32_13 : i32
    scf.if %17 {
      %c0_14 = arith.constant 0 : index
      %c0_15 = arith.constant 0 : index
      %18 = vector.load %arg3[%c0_14, %c0_15] : memref<64x4xf32, #tpu.memory_space<vmem>>, vector<64x4xf32>
      %c0_16 = arith.constant 0 : index
      %c0_17 = arith.constant 0 : index
      %19 = vector.load %arg4[%c0_16, %c0_17] : memref<1x4xf32, #tpu.memory_space<vmem>>, vector<1x4xf32>
      %c0_18 = arith.constant 0 : index
      %c0_19 = arith.constant 0 : index
      %20 = vector.load %arg5[%c0_18, %c0_19] : memref<64x4xf32, #tpu.memory_space<vmem>>, vector<64x4xf32>
      %c0_20 = arith.constant 0 : index
      %c0_21 = arith.constant 0 : index
      %21 = vector.load %arg6[%c0_20, %c0_21] : memref<64x1xf32, #tpu.memory_space<vmem>>, vector<64x1xf32>
      %c0_22 = arith.constant 0 : index
      %c0_23 = arith.constant 0 : index
      %22 = vector.load %arg8[%c0_22, %c0_23] : memref<64x1xf32, #tpu.memory_space<vmem>>, vector<64x1xf32>
      %cst_24 = arith.constant 3.906250e-03 : f32
      %23 = vector.broadcast %cst_24 : f32 to vector<64x1xf32>
      %24 = arith.mulf %22, %23 : vector<64x1xf32>
      %25 = vector.broadcast %24 : vector<64x1xf32> to vector<64x4xf32>
      %26 = arith.mulf %18, %25 : vector<64x4xf32>
      %cst_25 = arith.constant dense<0.000000e+00> : vector<4xf32>
      %27 = vector.multi_reduction <add>, %26, %cst_25 [0] : vector<64x4xf32> to vector<4xf32>
      %28 = vector.shape_cast %27 : vector<4xf32> to vector<1x4xf32>
      %29 = arith.addf %28, %19 : vector<1x4xf32>
      %cst_26 = arith.constant 0.000000e+00 : f32
      %30 = vector.broadcast %cst_26 : f32 to vector<1x4xf32>
      %31 = arith.maximumf %29, %30 : vector<1x4xf32>
      %32 = vector.broadcast %31 : vector<1x4xf32> to vector<64x4xf32>
      %33 = arith.mulf %20, %32 : vector<64x4xf32>
      %cst_27 = arith.constant dense<0.000000e+00> : vector<64xf32>
      %34 = vector.multi_reduction <add>, %33, %cst_27 [1] : vector<64x4xf32> to vector<64xf32>
      %35 = vector.shape_cast %34 : vector<64xf32> to vector<64x1xf32>
      %36 = arith.addf %35, %21 : vector<64x1xf32>
      %c0_28 = arith.constant 0 : index
      %c0_29 = arith.constant 0 : index
      %37 = vector.load %arg9[%c0_28, %c0_29] : memref<64x1xf32, #tpu.memory_space<vmem>>, vector<64x1xf32>
      %38 = vector.broadcast %37 : vector<64x1xf32> to vector<64x4xf32>
      %39 = arith.mulf %18, %38 : vector<64x4xf32>
      %cst_30 = arith.constant dense<0.000000e+00> : vector<4xf32>
      %40 = vector.multi_reduction <add>, %39, %cst_30 [0] : vector<64x4xf32> to vector<4xf32>
      %41 = vector.shape_cast %40 : vector<4xf32> to vector<1x4xf32>
      %42 = arith.addf %41, %19 : vector<1x4xf32>
      %cst_31 = arith.constant 0.000000e+00 : f32
      %43 = vector.broadcast %cst_31 : f32 to vector<1x4xf32>
      %44 = arith.maximumf %42, %43 : vector<1x4xf32>
      %45 = vector.broadcast %44 : vector<1x4xf32> to vector<64x4xf32>
      %46 = arith.mulf %20, %45 : vector<64x4xf32>
      %cst_32 = arith.constant dense<0.000000e+00> : vector<64xf32>
      %47 = vector.multi_reduction <add>, %46, %cst_32 [1] : vector<64x4xf32> to vector<64xf32>
      %48 = vector.shape_cast %47 : vector<64xf32> to vector<64x1xf32>
      %49 = arith.addf %48, %21 : vector<64x1xf32>
      %50 = arith.addf %36, %49 : vector<64x1xf32>
      %51 = arith.negf %50 : vector<64x1xf32>
      %52 = math.exp %51 : vector<64x1xf32>
      %cst_33 = arith.constant 1.000000e+00 : f32
      %53 = vector.broadcast %cst_33 : f32 to vector<64x1xf32>
      %54 = arith.addf %53, %52 : vector<64x1xf32>
      %55 = arith.divf %53, %54 : vector<64x1xf32>
      %c0_34 = arith.constant 0 : index
      %c0_35 = arith.constant 0 : index
      %c0_36 = arith.constant 0 : index
      %56 = vector.load %arg7[%c0_34, %c0_35, %c0_36] : memref<1x64x1xf32, #tpu.memory_space<vmem>>, vector<1x64x1xf32>
      %57 = vector.shape_cast %56 : vector<1x64x1xf32> to vector<64x1xf32>
      %58 = vector.shape_cast %55 : vector<64x1xf32> to vector<1x64x1xf32>
      tpu.vector_store %arg7[%c0_34, %c0_35, %c0_36], %58 {strides = array<i32>} : memref<1x64x1xf32, #tpu.memory_space<vmem>>, vector<1x64x1xf32>,
    } else {
    }
    return
  }
  func.func @transform_0(%arg0: i32, %arg1: i32) -> (i32, i32, i32) {
    %c0_i32 = arith.constant 0 : i32
    %c0_i32_0 = arith.constant 0 : i32
    return %arg0, %c0_i32, %arg1 : i32, i32, i32
  }
  func.func @transform_1(%arg0: i32, %arg1: i32) -> (i32, i32) {
    %c0_i32 = arith.constant 0 : i32
    %c0_i32_0 = arith.constant 0 : i32
    %c0_i32_1 = arith.constant 0 : i32
    return %c0_i32, %c0_i32_0 : i32, i32
  }
  func.func @transform_2(%arg0: i32, %arg1: i32) -> (i32, i32) {
    %c0_i32 = arith.constant 0 : i32
    %c0_i32_0 = arith.constant 0 : i32
    %c0_i32_1 = arith.constant 0 : i32
    return %c0_i32, %c0_i32_0 : i32, i32
  }
  func.func @transform_3(%arg0: i32, %arg1: i32) -> (i32, i32) {
    %c0_i32 = arith.constant 0 : i32
    %c0_i32_0 = arith.constant 0 : i32
    %c0_i32_1 = arith.constant 0 : i32
    return %c0_i32, %c0_i32_0 : i32, i32
  }
  func.func @transform_4(%arg0: i32, %arg1: i32) -> (i32, i32) {
    %c0_i32 = arith.constant 0 : i32
    %c0_i32_0 = arith.constant 0 : i32
    %c0_i32_1 = arith.constant 0 : i32
    return %c0_i32, %c0_i32_0 : i32, i32
  }
  func.func @transform_5(%arg0: i32, %arg1: i32) -> (i32, i32, i32) {
    %c0_i32 = arith.constant 0 : i32
    %c0_i32_0 = arith.constant 0 : i32
    %c0_i32_1 = arith.constant 0 : i32
    return %arg0, %c0_i32, %c0_i32_0 : i32, i32, i32
  }
}

</mosaic_0001>

<llo_original>
// kernel: tpu_custom_call.1
$region0: #{tpu_custom_call.1}
  #allocation0 [shape = 'u32[]', space=smem, size = 0x4, offset = 0x4, fixed_abs, tag = 'smem constant byte address 0x4 - core index']
  #allocation1 [shape = 'u32[144,128]{1,0:T(1,128)}', space=vmem, size = 0x12000, scoped, tag = 'internal scratch']
  #allocation2 [shape = 'f32[64,1]{1,0:T(8,128)}', space=vmem, size = 0x8000, scoped, tag = 'scratch operand']
  #allocation3 [shape = 'f32[64,1]{1,0:T(8,128)}', space=vmem, size = 0x8000, scoped, tag = 'scratch operand']
  %s0 = inlined_call_operand.hbm [shape: f32[2,64,256], index: 0, kind: input, shape index: {}]
  %s1 = inlined_call_operand.vmem [shape: f32[64,4], index: 1, kind: input, shape index: {}]
  %s2 = inlined_call_operand.vmem [shape: f32[1,4], index: 2, kind: input, shape index: {}]
  %s3 = inlined_call_operand.vmem [shape: f32[64,4], index: 3, kind: input, shape index: {}]
  %s4 = inlined_call_operand.vmem [shape: f32[64,1], index: 4, kind: input, shape index: {}]
  %s5 = inlined_call_operand.vmem [shape: f32[2,64,1], index: 5, kind: output, shape index: {}]
  %s6 = sld [smem:[#allocation0]]
  $region65: #{tpu_custom_call.1} parent=0
    _
  %s8 = ssub.s32 1, %s6
  %s9 = scalar_select 0, %s8, %s6
  $region1: #{tpu_custom_call.1} parent=0
    #allocation4 [shape = 'u8[131072]{0}', space=vmem, size = 0x20000, scoped, tag = 'input window, operand 0']
    #allocation5 [shape = 's32[2]{0}', space=sflag, size = 0x8, scoped, tag = 'scoped memory for tpu_custom_call.1']
    %10 = vsyncpa [#allocation5], 0
    %s11 = scalar_lea.sflag [#allocation5], 1
    %12 = vsyncpa %s11, 0
    loop: start=0, step=1, limit=4
    $region2: #{tpu_custom_call.1} parent=1 // loop_pre_header
      _
    $region3: #{tpu_custom_call.1} parent=1 // loop_header
      %s14 = sphi 0, %s18
      %p15 = scmp.ge.s32.totalorder %s14, 4
      %s21 = sphi 0, %s33
      %s22 = sphi 0, %s29
      %s23 = sphi 0, %s21
      %s24 = sphi 0, %s22
      %s25 = sphi 0, %s23
      %s26 = sphi 0, %s24
      %s38 = sphi 0, %s40
      %s41 = sphi 0, %s38
      %s42 = sphi 0, %s41
      %s58 = sphi 0, %s42
      %s62 = sphi 0, %s62
      %s64 = sphi 0, %s62
      %s65 = sphi 0, %s64
      %s79 = sphi 0, %s65
      %s83 = sphi 0, %s83
      %s85 = sphi 0, %s83
      %s86 = sphi 0, %s85
      %s100 = sphi 0, %s86
      %s104 = sphi 0, %s104
      %s106 = sphi 0, %s104
      %s107 = sphi 0, %s106
      %s121 = sphi 0, %s107
      %s125 = sphi 0, %s125
      %s127 = sphi 0, %s125
      %s128 = sphi 0, %s127
      %s142 = sphi 0, %s128
      %s148 = sphi 0, %s150
      %s151 = sphi 0, %s148
      %s152 = sphi 0, %s151
      %s168 = sphi 0, %s152
    $region4: #{tpu_custom_call.1} parent=1 // loop_header_branch
      %17 = sbr.rel (%p15) target = $region8
    $region5: #{tpu_custom_call.1} parent=1 // loop_body
      %s19 = ssub.s32 %s14, 1
      %s20 = ssub.s32 %s14, 2
      %s27 = sadd.s32 1, %s22
      %p28 = scmp.ge.s32.totalorder %s27, 1
      %s29 = scalar_select %p28, 0, %s27
      %s30 = sadd.s32 1, %s21
      %s31 = scalar_select %p28, %s30, %s21
      %p32 = scmp.ge.s32.totalorder %s31, 2
      %s33 = scalar_select %p32, 0, %s31
      %s34 = ssub.s32 %s21, %s33
      %s35 = ssub.s32 %s22, %s29
      %s36 = sor.u32 %s34, %s35
      %p37 = scmp.eq.s32.totalorder %s36, 0
      %s39 = sadd.s32 %s38, 1
      %s40 = scalar_select %p37, %s38, %s39
      %p43 = pneg %p37
      %p44 = scmp.eq.s32.totalorder %s14, 1
      %p45 = por %p43, %p44
      %p46 = scmp.ne.s32.totalorder %s38, %s41
      %p47 = scmp.eq.s32.totalorder %s14, 0
      %p48 = por %p46, %p47
      %p49 = scmp.ne.s32.totalorder %s38, %s41
      %p50 = scmp.eq.s32.totalorder %s19, 1
      %p51 = por %p49, %p50
      %p52 = scmp.ne.s32.totalorder %s41, %s42
      %p53 = scmp.eq.s32.totalorder %s19, 0
      %p54 = por %p52, %p53
      %p55 = scmp.ne.s32.totalorder %s41, %s42
      %p56 = scmp.eq.s32.totalorder %s20, 1
      %p57 = por %p55, %p56
      %p59 = scmp.ne.s32.totalorder %s42, %s58
      %p60 = scmp.eq.s32.totalorder %s20, 0
      %p61 = por %p59, %p60
      %s63 = sadd.s32 %s62, 1
      %p66 = scmp.eq.s32.totalorder %s14, 1
      %p67 = scmp.ne.s32.totalorder %s62, %s64
      %p68 = scmp.eq.s32.totalorder %s14, 0
      %p69 = por %p67, %p68
      %p70 = scmp.ne.s32.totalorder %s62, %s64
      %p71 = scmp.eq.s32.totalorder %s19, 1
      %p72 = por %p70, %p71
      %p73 = scmp.ne.s32.totalorder %s64, %s65
      %p74 = scmp.eq.s32.totalorder %s19, 0
      %p75 = por %p73, %p74
      %p76 = scmp.ne.s32.totalorder %s64, %s65
      %p77 = scmp.eq.s32.totalorder %s20, 1
      %p78 = por %p76, %p77
      %p80 = scmp.ne.s32.totalorder %s65, %s79
      %p81 = scmp.eq.s32.totalorder %s20, 0
      %p82 = por %p80, %p81
      %s84 = sadd.s32 %s83, 1
      %p87 = scmp.eq.s32.totalorder %s14, 1
      %p88 = scmp.ne.s32.totalorder %s83, %s85
      %p89 = scmp.eq.s32.totalorder %s14, 0
      %p90 = por %p88, %p89
      %p91 = scmp.ne.s32.totalorder %s83, %s85
      %p92 = scmp.eq.s32.totalorder %s19, 1
      %p93 = por %p91, %p92
      %p94 = scmp.ne.s32.totalorder %s85, %s86
      %p95 = scmp.eq.s32.totalorder %s19, 0
      %p96 = por %p94, %p95
      %p97 = scmp.ne.s32.totalorder %s85, %s86
      %p98 = scmp.eq.s32.totalorder %s20, 1
      %p99 = por %p97, %p98
      %p101 = scmp.ne.s32.totalorder %s86, %s100
      %p102 = scmp.eq.s32.totalorder %s20, 0
      %p103 = por %p101, %p102
      %s105 = sadd.s32 %s104, 1
      %p108 = scmp.eq.s32.totalorder %s14, 1
      %p109 = scmp.ne.s32.totalorder %s104, %s106
      %p110 = scmp.eq.s32.totalorder %s14, 0
      %p111 = por %p109, %p110
      %p112 = scmp.ne.s32.totalorder %s104, %s106
      %p113 = scmp.eq.s32.totalorder %s19, 1
      %p114 = por %p112, %p113
      %p115 = scmp.ne.s32.totalorder %s106, %s107
      %p116 = scmp.eq.s32.totalorder %s19, 0
      %p117 = por %p115, %p116
      %p118 = scmp.ne.s32.totalorder %s106, %s107
      %p119 = scmp.eq.s32.totalorder %s20, 1
      %p120 = por %p118, %p119
      %p122 = scmp.ne.s32.totalorder %s107, %s121
      %p123 = scmp.eq.s32.totalorder %s20, 0
      %p124 = por %p122, %p123
      %s126 = sadd.s32 %s125, 1
      %p129 = scmp.eq.s32.totalorder %s14, 1
      %p130 = scmp.ne.s32.totalorder %s125, %s127
      %p131 = scmp.eq.s32.totalorder %s14, 0
      %p132 = por %p130, %p131
      %p133 = scmp.ne.s32.totalorder %s125, %s127
      %p134 = scmp.eq.s32.totalorder %s19, 1
      %p135 = por %p133, %p134
      %p136 = scmp.ne.s32.totalorder %s127, %s128
      %p137 = scmp.eq.s32.totalorder %s19, 0
      %p138 = por %p136, %p137
      %p139 = scmp.ne.s32.totalorder %s127, %s128
      %p140 = scmp.eq.s32.totalorder %s20, 1
      %p141 = por %p139, %p140
      %p143 = scmp.ne.s32.totalorder %s128, %s142
      %p144 = scmp.eq.s32.totalorder %s20, 0
      %p145 = por %p143, %p144
      %s146 = ssub.s32 %s21, %s33
      %p147 = scmp.eq.s32.totalorder %s146, 0
      %s149 = sadd.s32 %s148, 1
      %s150 = scalar_select %p147, %s148, %s149
      %p153 = pneg %p147
      %p154 = scmp.eq.s32.totalorder %s14, 1
      %p155 = por %p153, %p154
      %p156 = scmp.ne.s32.totalorder %s148, %s151
      %p157 = scmp.eq.s32.totalorder %s14, 0
      %p158 = por %p156, %p157
      %p159 = scmp.ne.s32.totalorder %s148, %s151
      %p160 = scmp.eq.s32.totalorder %s19, 1
      %p161 = por %p159, %p160
      %p162 = scmp.ne.s32.totalorder %s151, %s152
      %p163 = scmp.eq.s32.totalorder %s19, 0
      %p164 = por %p162, %p163
      %p165 = scmp.ne.s32.totalorder %s151, %s152
      %p166 = scmp.eq.s32.totalorder %s20, 1
      %p167 = por %p165, %p166
      %p169 = scmp.ne.s32.totalorder %s152, %s168
      %p170 = scmp.eq.s32.totalorder %s20, 0
      %p171 = por %p169, %p170
      %p172 = scmp.le.s32.totalorder 1, %s14
      %p173 = scmp.lt.s32.totalorder %s14, 3
      %p174 = pnand %p172, %p173
      %p175 = pneg %p174
      // Predicated region
      $region9: #{tpu_custom_call.1} parent=5 // pred_check
        _
      $region10: #{tpu_custom_call.1} parent=5 // pred_check_branch
        %177 = sbr.rel (%p174) target = $region12
      $region11: #{tpu_custom_call.1} parent=5 // pred_region
        %s178 = ssub.s32 %s14, 1
        // Predicated region
        $region13: #{tpu_custom_call.1} parent=11 // pred_check
          %p179 = pneg %p75
        $region14: #{tpu_custom_call.1} parent=11 // pred_check_branch
          %181 = sbr.rel (%p179) target = $region16
        $region15: #{tpu_custom_call.1} parent=11 // pred_region
          _
        $region16: #{tpu_custom_call.1} parent=11 // pred_fallthru
          _
        // Predicated region
        $region17: #{tpu_custom_call.1} parent=11 // pred_check
          %p182 = pneg %p96
        $region18: #{tpu_custom_call.1} parent=11 // pred_check_branch
          %184 = sbr.rel (%p182) target = $region20
        $region19: #{tpu_custom_call.1} parent=11 // pred_region
          _
        $region20: #{tpu_custom_call.1} parent=11 // pred_fallthru
          _
        // Predicated region
        $region21: #{tpu_custom_call.1} parent=11 // pred_check
          %p185 = pneg %p117
        $region22: #{tpu_custom_call.1} parent=11 // pred_check_branch
          %187 = sbr.rel (%p185) target = $region24
        $region23: #{tpu_custom_call.1} parent=11 // pred_region
          _
        $region24: #{tpu_custom_call.1} parent=11 // pred_fallthru
          _
        // Predicated region
        $region25: #{tpu_custom_call.1} parent=11 // pred_check
          %p188 = pneg %p138
        $region26: #{tpu_custom_call.1} parent=11 // pred_check_branch
          %190 = sbr.rel (%p188) target = $region28
        $region27: #{tpu_custom_call.1} parent=11 // pred_region
          _
        $region28: #{tpu_custom_call.1} parent=11 // pred_fallthru
          _
      $region12: #{tpu_custom_call.1} parent=5 // pred_fallthru
        _
      %p191 = scmp.lt.s32.totalorder %s14, 2
      // Predicated region
      $region29: #{tpu_custom_call.1} parent=5 // pred_check
        %p192 = pneg %p191
      $region30: #{tpu_custom_call.1} parent=5 // pred_check_branch
        %194 = sbr.rel (%p192) target = $region32
      $region31: #{tpu_custom_call.1} parent=5 // pred_region
        // Predicated region
        $region33: #{tpu_custom_call.1} parent=31 // pred_check
          %p195 = pneg %p48
        $region34: #{tpu_custom_call.1} parent=31 // pred_check_branch
          %197 = sbr.rel (%p195) target = $region36
        $region35: #{tpu_custom_call.1} parent=31 // pred_region
          %s198 = sand.u32 %s38, 1
          %s199 = scalar_lea.sflag [#allocation5], %s198
          %s200 = sand.u32 %s38, 1
          %s201 = smul.addr %s200, 128
          %s202 = scalar_lea.vmem [#allocation4], %s201
          %s203 = smul.u32 2, %s22
          %s205 = ssub.s32 2048, 2048
          %206 = vsyncadd %s199, %s205
          %s207 = smul.addr %s21, 16
          %s208 = sadd.s32 %s203, %s207
          %s209 = smul.addr %s208, 128
          %s210 = scalar_lea.hbm %s0, %s209
          %s211 = sshll.u32 %s202, 4
          %s212 = int_to_ptr.vmem [resolvable:$true] %s211
          %217 = dma.hbm_to_vmem [thread:$0]  %s210, 2048, %s212, %s199, 256, 256, 16
        $region36: #{tpu_custom_call.1} parent=31 // pred_fallthru
          _
      $region32: #{tpu_custom_call.1} parent=5 // pred_fallthru
        _
      %p218 = scmp.le.s32.totalorder 1, %s14
      %p219 = scmp.lt.s32.totalorder %s14, 3
      %p220 = pnand %p218, %p219
      %p221 = pneg %p220
      // Predicated region
      $region37: #{tpu_custom_call.1} parent=5 // pred_check
        _
      $region38: #{tpu_custom_call.1} parent=5 // pred_check_branch
        %223 = sbr.rel (%p220) target = $region40
      $region39: #{tpu_custom_call.1} parent=5 // pred_region
        %s224 = ssub.s32 %s14, 1
        %s225 = sand.u32 %s41, 1
        %s226 = scalar_lea.sflag [#allocation5], %s225
        %s227 = sand.u32 %s41, 1
        %s228 = smul.addr %s227, 128
        %s229 = scalar_lea.vmem [#allocation4], %s228
        // Predicated region
        $region41: #{tpu_custom_call.1} parent=39 // pred_check
          %p230 = pneg %p54
        $region42: #{tpu_custom_call.1} parent=39 // pred_check_branch
          %232 = sbr.rel (%p230) target = $region44
        $region43: #{tpu_custom_call.1} parent=39 // pred_region
          %233 = dma.done %s226, 2048
        $region44: #{tpu_custom_call.1} parent=39 // pred_fallthru
          _
        %s234 = sand.u32 %s41, 1
        %s235 = scalar_lea.sflag [#allocation5], %s234
        %s236 = sand.u32 %s41, 1
        %s237 = smul.addr %s236, 128
        %s238 = scalar_lea.vmem [#allocation4], %s237
        %p239 = pneg %p54
        %p240 = pneg %p51
        %p241 = pneg %p75
        %p242 = pneg %p72
        %p243 = pneg %p96
        %p244 = pneg %p93
        %p245 = pneg %p117
        %p246 = pneg %p114
        %p247 = pneg %p138
        %p248 = pneg %p135
        %p249 = pneg %p164
        %p250 = pneg %p161
        %p251 = scmp.lt.s32.totalorder %s23, 1
        %s252 = scalar_select %p251, %s23, 1
        %s253 = smul.addr %s252, 8
        %s254 = smul.addr %s253, 8
        %s255 = scalar_lea.vmem %s5, %s254
        %s256 = smul.u32 2, %s24
        %p257 = scmp.lt.s32.totalorder %s23, 1
        %s258 = scalar_select %p257, %s23, 1
        %s259 = smul.addr %s258, 8
        %s260 = smul.addr %s259, 8
        %s261 = scalar_lea.vmem %s5, %s260
        %p262 = scmp.eq.s32.totalorder %s24, 0
        // Predicated region
        $region45: #{tpu_custom_call.1} parent=39 // pred_check
          %p263 = pneg %p262
        $region46: #{tpu_custom_call.1} parent=39 // pred_check_branch
          %265 = sbr.rel (%p263) target = $region48
        $region47: #{tpu_custom_call.1} parent=39 // pred_region
          %vm266 = vcmask 7168
          %267 = vst.msk [vmem:[#allocation2] sm:$0xff] %vm266, 0.0
          %268 = vst.msk [vmem:[#allocation2 + $0x8] sm:$0xff] %vm266, 0.0
          %269 = vst.msk [vmem:[#allocation2 + $0x10] sm:$0xff] %vm266, 0.0
          %270 = vst.msk [vmem:[#allocation2 + $0x18] sm:$0xff] %vm266, 0.0
          %271 = vst.msk [vmem:[#allocation2 + $0x20] sm:$0xff] %vm266, 0.0
          %272 = vst.msk [vmem:[#allocation2 + $0x28] sm:$0xff] %vm266, 0.0
          %273 = vst.msk [vmem:[#allocation2 + $0x30] sm:$0xff] %vm266, 0.0
          %274 = vst.msk [vmem:[#allocation2 + $0x38] sm:$0xff] %vm266, 0.0
          %275 = vst.msk [vmem:[#allocation3] sm:$0xff] %vm266, -inf
          %276 = vst.msk [vmem:[#allocation3 + $0x8] sm:$0xff] %vm266, -inf
          %277 = vst.msk [vmem:[#allocation3 + $0x10] sm:$0xff] %vm266, -inf
          %278 = vst.msk [vmem:[#allocation3 + $0x18] sm:$0xff] %vm266, -inf
          %279 = vst.msk [vmem:[#allocation3 + $0x20] sm:$0xff] %vm266, -inf
          %280 = vst.msk [vmem:[#allocation3 + $0x28] sm:$0xff] %vm266, -inf
          %281 = vst.msk [vmem:[#allocation3 + $0x30] sm:$0xff] %vm266, -inf
          %282 = vst.msk [vmem:[#allocation3 + $0x38] sm:$0xff] %vm266, -inf
        $region48: #{tpu_custom_call.1} parent=39 // pred_fallthru
          _
        %v283 = vld [vmem:[%s229] sm:$0xff]
        %v284 = vld [vmem:[%s229 + $0x8] sm:$0xff]
        %v285 = vld [vmem:[%s229 + $0x10] sm:$0xff]
        %v286 = vld [vmem:[%s229 + $0x18] sm:$0xff]
        %v287 = vld [vmem:[%s229 + $0x20] sm:$0xff]
        %v288 = vld [vmem:[%s229 + $0x28] sm:$0xff]
        %v289 = vld [vmem:[%s229 + $0x30] sm:$0xff]
        %v290 = vld [vmem:[%s229 + $0x38] sm:$0xff]
        %v291 = vld [vmem:[%s229 + $0x40] sm:$0xff]
        %v292 = vld [vmem:[%s229 + $0x48] sm:$0xff]
        %v293 = vld [vmem:[%s229 + $0x50] sm:$0xff]
        %v294 = vld [vmem:[%s229 + $0x58] sm:$0xff]
        %v295 = vld [vmem:[%s229 + $0x60] sm:$0xff]
        %v296 = vld [vmem:[%s229 + $0x68] sm:$0xff]
        %v297 = vld [vmem:[%s229 + $0x70] sm:$0xff]
        %v298 = vld [vmem:[%s229 + $0x78] sm:$0xff]
        %v299 = vld [vmem:[#allocation2] sm:$0xff]
        %v300 = vld [vmem:[#allocation2 + $0x8] sm:$0xff]
        %v301 = vld [vmem:[#allocation2 + $0x10] sm:$0xff]
        %v302 = vld [vmem:[#allocation2 + $0x18] sm:$0xff]
        %v303 = vld [vmem:[#allocation2 + $0x20] sm:$0xff]
        %v304 = vld [vmem:[#allocation2 + $0x28] sm:$0xff]
        %v305 = vld [vmem:[#allocation2 + $0x30] sm:$0xff]
        %v306 = vld [vmem:[#allocation2 + $0x38] sm:$0xff]
        %v307 = vadd.f32 %v283, %v284
        %308 = vadd.xlane.f32.xlu0 %v307
        %v309 = vpop.xlane.xlu0 %308
        %v310 = vadd.f32 %v285, %v286
        %311 = vadd.xlane.f32.xlu0 %v310
        %v312 = vpop.xlane.xlu0 %311
        %v313 = vadd.f32 %v287, %v288
        %314 = vadd.xlane.f32.xlu0 %v313
        %v315 = vpop.xlane.xlu0 %314
        %v316 = vadd.f32 %v289, %v290
        %317 = vadd.xlane.f32.xlu0 %v316
        %v318 = vpop.xlane.xlu0 %317
        %v319 = vadd.f32 %v291, %v292
        %320 = vadd.xlane.f32.xlu0 %v319
        %v321 = vpop.xlane.xlu0 %320
        %v322 = vadd.f32 %v293, %v294
        %323 = vadd.xlane.f32.xlu0 %v322
        %v324 = vpop.xlane.xlu0 %323
        %v325 = vadd.f32 %v295, %v296
        %326 = vadd.xlane.f32.xlu0 %v325
        %v327 = vpop.xlane.xlu0 %326
        %v328 = vadd.f32 %v297, %v298
        %329 = vadd.xlane.f32.xlu0 %v328
        %v330 = vpop.xlane.xlu0 %329
        %v331 = vadd.f32 %v299, %v309
        %v332 = vadd.f32 %v300, %v312
        %v333 = vadd.f32 %v301, %v315
        %v334 = vadd.f32 %v302, %v318
        %v335 = vadd.f32 %v303, %v321
        %v336 = vadd.f32 %v304, %v324
        %v337 = vadd.f32 %v305, %v327
        %v338 = vadd.f32 %v306, %v330
        %vm339 = vcmask 7168
        %340 = vst.msk [vmem:[#allocation2] sm:$0xff] %vm339, %v331
        %341 = vst.msk [vmem:[#allocation2 + $0x8] sm:$0xff] %vm339, %v332
        %342 = vst.msk [vmem:[#allocation2 + $0x10] sm:$0xff] %vm339, %v333
        %343 = vst.msk [vmem:[#allocation2 + $0x18] sm:$0xff] %vm339, %v334
        %344 = vst.msk [vmem:[#allocation2 + $0x20] sm:$0xff] %vm339, %v335
        %345 = vst.msk [vmem:[#allocation2 + $0x28] sm:$0xff] %vm339, %v336
        %346 = vst.msk [vmem:[#allocation2 + $0x30] sm:$0xff] %vm339, %v337
        %347 = vst.msk [vmem:[#allocation2 + $0x38] sm:$0xff] %vm339, %v338
        %v348 = vld [vmem:[#allocation3] sm:$0xff]
        %v349 = vld [vmem:[#allocation3 + $0x8] sm:$0xff]
        %v350 = vld [vmem:[#allocation3 + $0x10] sm:$0xff]
        %v351 = vld [vmem:[#allocation3 + $0x18] sm:$0xff]
        %v352 = vld [vmem:[#allocation3 + $0x20] sm:$0xff]
        %v353 = vld [vmem:[#allocation3 + $0x28] sm:$0xff]
        %v354 = vld [vmem:[#allocation3 + $0x30] sm:$0xff]
        %v355 = vld [vmem:[#allocation3 + $0x38] sm:$0xff]
        %v356 = vmax.f32 %v283, %v284
        %357 = vmax.xlane.f32.xlu0 %v356
        %v358 = vpop.xlane.xlu0 %357
        %v359 = vmax.f32 %v285, %v286
        %360 = vmax.xlane.f32.xlu0 %v359
        %v361 = vpop.xlane.xlu0 %360
        %v362 = vmax.f32 %v287, %v288
        %363 = vmax.xlane.f32.xlu0 %v362
        %v364 = vpop.xlane.xlu0 %363
        %v365 = vmax.f32 %v289, %v290
        %366 = vmax.xlane.f32.xlu0 %v365
        %v367 = vpop.xlane.xlu0 %366
        %v368 = vmax.f32 %v291, %v292
        %369 = vmax.xlane.f32.xlu0 %v368
        %v370 = vpop.xlane.xlu0 %369
        %v371 = vmax.f32 %v293, %v294
        %372 = vmax.xlane.f32.xlu0 %v371
        %v373 = vpop.xlane.xlu0 %372
        %v374 = vmax.f32 %v295, %v296
        %375 = vmax.xlane.f32.xlu0 %v374
        %v376 = vpop.xlane.xlu0 %375
        %v377 = vmax.f32 %v297, %v298
        %378 = vmax.xlane.f32.xlu0 %v377
        %v379 = vpop.xlane.xlu0 %378
        %v380 = vmax.f32 %v348, %v358
        %v381 = vmax.f32 %v349, %v361
        %v382 = vmax.f32 %v350, %v364
        %v383 = vmax.f32 %v351, %v367
        %v384 = vmax.f32 %v352, %v370
        %v385 = vmax.f32 %v353, %v373
        %v386 = vmax.f32 %v354, %v376
        %v387 = vmax.f32 %v355, %v379
        %388 = vst.msk [vmem:[#allocation3] sm:$0xff] %vm339, %v380
        %389 = vst.msk [vmem:[#allocation3 + $0x8] sm:$0xff] %vm339, %v381
        %390 = vst.msk [vmem:[#allocation3 + $0x10] sm:$0xff] %vm339, %v382
        %391 = vst.msk [vmem:[#allocation3 + $0x18] sm:$0xff] %vm339, %v383
        %392 = vst.msk [vmem:[#allocation3 + $0x20] sm:$0xff] %vm339, %v384
        %393 = vst.msk [vmem:[#allocation3 + $0x28] sm:$0xff] %vm339, %v385
        %394 = vst.msk [vmem:[#allocation3 + $0x30] sm:$0xff] %vm339, %v386
        %395 = vst.msk [vmem:[#allocation3 + $0x38] sm:$0xff] %vm339, %v387
        // Predicated region
        $region49: #{tpu_custom_call.1} parent=39 // pred_check
          %p396 = pneg %p262
        $region50: #{tpu_custom_call.1} parent=39 // pred_check_branch
          %398 = sbr.rel (%p396) target = $region52
        $region51: #{tpu_custom_call.1} parent=39 // pred_region
          %v399 = vld [vmem:[%s1] sm:$0xff]
          %v400 = vld [vmem:[%s1 + $0x8] sm:$0xff]
          %v401 = vld [vmem:[%s1 + $0x10] sm:$0xff]
          %v402 = vld [vmem:[%s1 + $0x18] sm:$0xff]
          %v403 = vld [vmem:[%s1 + $0x20] sm:$0xff]
          %v404 = vld [vmem:[%s1 + $0x28] sm:$0xff]
          %v405 = vld [vmem:[%s1 + $0x30] sm:$0xff]
          %v406 = vld [vmem:[%s1 + $0x38] sm:$0xff]
          %v407 = vld [vmem:[%s2] sm:$0x1]
          %v408 = vld [vmem:[%s3] sm:$0xff]
          %v409 = vld [vmem:[%s3 + $0x8] sm:$0xff]
          %v410 = vld [vmem:[%s3 + $0x10] sm:$0xff]
          %v411 = vld [vmem:[%s3 + $0x18] sm:$0xff]
          %v412 = vld [vmem:[%s3 + $0x20] sm:$0xff]
          %v413 = vld [vmem:[%s3 + $0x28] sm:$0xff]
          %v414 = vld [vmem:[%s3 + $0x30] sm:$0xff]
          %v415 = vld [vmem:[%s3 + $0x38] sm:$0xff]
          %v416 = vld [vmem:[%s4] sm:$0xff]
          %v417 = vld [vmem:[%s4 + $0x8] sm:$0xff]
          %v418 = vld [vmem:[%s4 + $0x10] sm:$0xff]
          %v419 = vld [vmem:[%s4 + $0x18] sm:$0xff]
          %v420 = vld [vmem:[%s4 + $0x20] sm:$0xff]
          %v421 = vld [vmem:[%s4 + $0x28] sm:$0xff]
          %v422 = vld [vmem:[%s4 + $0x30] sm:$0xff]
          %v423 = vld [vmem:[%s4 + $0x38] sm:$0xff]
          %v424 = vld [vmem:[#allocation2] sm:$0xff]
          %v425 = vld [vmem:[#allocation2 + $0x8] sm:$0xff]
          %v426 = vld [vmem:[#allocation2 + $0x10] sm:$0xff]
          %v427 = vld [vmem:[#allocation2 + $0x18] sm:$0xff]
          %v428 = vld [vmem:[#allocation2 + $0x20] sm:$0xff]
          %v429 = vld [vmem:[#allocation2 + $0x28] sm:$0xff]
          %v430 = vld [vmem:[#allocation2 + $0x30] sm:$0xff]
          %v431 = vld [vmem:[#allocation2 + $0x38] sm:$0xff]
          %v432 = vmul.f32 %v424, 0.00390625
          %v433 = vmul.f32 %v425, 0.00390625
          %v434 = vmul.f32 %v426, 0.00390625
          %v435 = vmul.f32 %v427, 0.00390625
          %v436 = vmul.f32 %v428, 0.00390625
          %v437 = vmul.f32 %v429, 0.00390625
          %v438 = vmul.f32 %v430, 0.00390625
          %v439 = vmul.f32 %v431, 0.00390625
          %441 = vset.pattern.permute.xlu0 0
          %442 = vperm.xlu0 %441, %v432
          %v443 = vpop.permute.xlu0 %442
          %446 = vset.pattern.permute.xlu0 0
          %447 = vperm.xlu0 %446, %v433
          %v448 = vpop.permute.xlu0 %447
          %451 = vset.pattern.permute.xlu0 0
          %452 = vperm.xlu0 %451, %v434
          %v453 = vpop.permute.xlu0 %452
          %456 = vset.pattern.permute.xlu0 0
          %457 = vperm.xlu0 %456, %v435
          %v458 = vpop.permute.xlu0 %457
          %461 = vset.pattern.permute.xlu0 0
          %462 = vperm.xlu0 %461, %v436
          %v463 = vpop.permute.xlu0 %462
          %466 = vset.pattern.permute.xlu0 0
          %467 = vperm.xlu0 %466, %v437
          %v468 = vpop.permute.xlu0 %467
          %471 = vset.pattern.permute.xlu0 0
          %472 = vperm.xlu0 %471, %v438
          %v473 = vpop.permute.xlu0 %472
          %476 = vset.pattern.permute.xlu0 0
          %477 = vperm.xlu0 %476, %v439
          %v478 = vpop.permute.xlu0 %477
          %v480 = vmul.f32 %v399, %v443
          %v481 = vmul.f32 %v400, %v448
          %v482 = vmul.f32 %v401, %v453
          %v483 = vmul.f32 %v402, %v458
          %v484 = vmul.f32 %v403, %v463
          %v485 = vmul.f32 %v404, %v468
          %v486 = vmul.f32 %v405, %v473
          %v487 = vmul.f32 %v406, %v478
          %vm488 = vcmask 31744
          %v489 = vsel %vm488, %v480, 0.0
          %v490 = vsel %vm488, %v481, 0.0
          %v491 = vadd.f32 %v489, %v490
          %v492 = vsel %vm488, %v482, 0.0
          %v493 = vadd.f32 %v491, %v492
          %v494 = vsel %vm488, %v483, 0.0
          %v495 = vadd.f32 %v493, %v494
          %v496 = vsel %vm488, %v484, 0.0
          %v497 = vadd.f32 %v495, %v496
          %v498 = vsel %vm488, %v485, 0.0
          %v499 = vadd.f32 %v497, %v498
          %v500 = vsel %vm488, %v486, 0.0
          %v501 = vadd.f32 %v499, %v500
          %v502 = vsel %vm488, %v487, 0.0
          %v503 = vadd.f32 %v501, %v502
          %v504 = vrot.slane %v503, 4
          %v505 = vadd.f32 %v503, %v504
          %v506 = vrot.slane %v505, 2
          %v507 = vadd.f32 %v505, %v506
          %v508 = vrot.slane %v507, 1
          %v509 = vadd.f32 %v507, %v508
          %v510 = vadd.f32 %v509, %v407
          %v511 = vmax.f32 %v510, 0.0
          %v512 = vlaneseq
          %v513 = vshrl.u32 %v512, 7
          %v514 = vsub.s32 0, %v513
          %v515 = vrot.slane %v511, %v514
          %v516 = vmul.f32 %v408, %v515
          %v517 = vmul.f32 %v409, %v515
          %v518 = vmul.f32 %v410, %v515
          %v519 = vmul.f32 %v411, %v515
          %v520 = vmul.f32 %v412, %v515
          %v521 = vmul.f32 %v413, %v515
          %v522 = vmul.f32 %v414, %v515
          %v523 = vmul.f32 %v415, %v515
          %v524 = vsel %vm488, %v516, 0.0
          %525 = vadd.xlane.f32.xlu0 %v524
          %v526 = vpop.xlane.xlu0 %525
          %v527 = vsel %vm488, %v517, 0.0
          %528 = vadd.xlane.f32.xlu0 %v527
          %v529 = vpop.xlane.xlu0 %528
          %v530 = vsel %vm488, %v518, 0.0
          %531 = vadd.xlane.f32.xlu0 %v530
          %v532 = vpop.xlane.xlu0 %531
          %v533 = vsel %vm488, %v519, 0.0
          %534 = vadd.xlane.f32.xlu0 %v533
          %v535 = vpop.xlane.xlu0 %534
          %v536 = vsel %vm488, %v520, 0.0
          %537 = vadd.xlane.f32.xlu0 %v536
          %v538 = vpop.xlane.xlu0 %537
          %v539 = vsel %vm488, %v521, 0.0
          %540 = vadd.xlane.f32.xlu0 %v539
          %v541 = vpop.xlane.xlu0 %540
          %v542 = vsel %vm488, %v522, 0.0
          %543 = vadd.xlane.f32.xlu0 %v542
          %v544 = vpop.xlane.xlu0 %543
          %v545 = vsel %vm488, %v523, 0.0
          %546 = vadd.xlane.f32.xlu0 %v545
          %v547 = vpop.xlane.xlu0 %546
          %v548 = vadd.f32 %v526, %v416
          %v549 = vadd.f32 %v529, %v417
          %v550 = vadd.f32 %v532, %v418
          %v551 = vadd.f32 %v535, %v419
          %v552 = vadd.f32 %v538, %v420
          %v553 = vadd.f32 %v541, %v421
          %v554 = vadd.f32 %v544, %v422
          %v555 = vadd.f32 %v547, %v423
          %v556 = vld [vmem:[#allocation3] sm:$0xff]
          %v557 = vld [vmem:[#allocation3 + $0x8] sm:$0xff]
          %v558 = vld [vmem:[#allocation3 + $0x10] sm:$0xff]
          %v559 = vld [vmem:[#allocation3 + $0x18] sm:$0xff]
          %v560 = vld [vmem:[#allocation3 + $0x20] sm:$0xff]
          %v561 = vld [vmem:[#allocation3 + $0x28] sm:$0xff]
          %v562 = vld [vmem:[#allocation3 + $0x30] sm:$0xff]
          %v563 = vld [vmem:[#allocation3 + $0x38] sm:$0xff]
          %565 = vset.pattern.permute.xlu0 0
          %566 = vperm.xlu0 %565, %v556
          %v567 = vpop.permute.xlu0 %566
          %570 = vset.pattern.permute.xlu0 0
          %571 = vperm.xlu0 %570, %v557
          %v572 = vpop.permute.xlu0 %571
          %575 = vset.pattern.permute.xlu0 0
          %576 = vperm.xlu0 %575, %v558
          %v577 = vpop.permute.xlu0 %576
          %580 = vset.pattern.permute.xlu0 0
          %581 = vperm.xlu0 %580, %v559
          %v582 = vpop.permute.xlu0 %581
          %585 = vset.pattern.permute.xlu0 0
          %586 = vperm.xlu0 %585, %v560
          %v587 = vpop.permute.xlu0 %586
          %590 = vset.pattern.permute.xlu0 0
          %591 = vperm.xlu0 %590, %v561
          %v592 = vpop.permute.xlu0 %591
          %595 = vset.pattern.permute.xlu0 0
          %596 = vperm.xlu0 %595, %v562
          %v597 = vpop.permute.xlu0 %596
          %600 = vset.pattern.permute.xlu0 0
          %601 = vperm.xlu0 %600, %v563
          %v602 = vpop.permute.xlu0 %601
          %v604 = vmul.f32 %v399, %v567
          %v605 = vmul.f32 %v400, %v572
          %v606 = vmul.f32 %v401, %v577
          %v607 = vmul.f32 %v402, %v582
          %v608 = vmul.f32 %v403, %v587
          %v609 = vmul.f32 %v404, %v592
          %v610 = vmul.f32 %v405, %v597
          %v611 = vmul.f32 %v406, %v602
          %v612 = vsel %vm488, %v604, 0.0
          %v613 = vsel %vm488, %v605, 0.0
          %v614 = vadd.f32 %v612, %v613
          %v615 = vsel %vm488, %v606, 0.0
          %v616 = vadd.f32 %v614, %v615
          %v617 = vsel %vm488, %v607, 0.0
          %v618 = vadd.f32 %v616, %v617
          %v619 = vsel %vm488, %v608, 0.0
          %v620 = vadd.f32 %v618, %v619
          %v621 = vsel %vm488, %v609, 0.0
          %v622 = vadd.f32 %v620, %v621
          %v623 = vsel %vm488, %v610, 0.0
          %v624 = vadd.f32 %v622, %v623
          %v625 = vsel %vm488, %v611, 0.0
          %v626 = vadd.f32 %v624, %v625
          %v627 = vrot.slane %v626, 4
          %v628 = vadd.f32 %v626, %v627
          %v629 = vrot.slane %v628, 2
          %v630 = vadd.f32 %v628, %v629
          %v631 = vrot.slane %v630, 1
          %v632 = vadd.f32 %v630, %v631
          %v633 = vadd.f32 %v632, %v407
          %v634 = vmax.f32 %v633, 0.0
          %v635 = vlaneseq
          %v636 = vshrl.u32 %v635, 7
          %v637 = vsub.s32 0, %v636
          %v638 = vrot.slane %v634, %v637
          %v639 = vmul.f32 %v408, %v638
          %v640 = vmul.f32 %v409, %v638
          %v641 = vmul.f32 %v410, %v638
          %v642 = vmul.f32 %v411, %v638
          %v643 = vmul.f32 %v412, %v638
          %v644 = vmul.f32 %v413, %v638
          %v645 = vmul.f32 %v414, %v638
          %v646 = vmul.f32 %v415, %v638
          %v647 = vsel %vm488, %v639, 0.0
          %648 = vadd.xlane.f32.xlu0 %v647
          %v649 = vpop.xlane.xlu0 %648
          %v650 = vsel %vm488, %v640, 0.0
          %651 = vadd.xlane.f32.xlu0 %v650
          %v652 = vpop.xlane.xlu0 %651
          %v653 = vsel %vm488, %v641, 0.0
          %654 = vadd.xlane.f32.xlu0 %v653
          %v655 = vpop.xlane.xlu0 %654
          %v656 = vsel %vm488, %v642, 0.0
          %657 = vadd.xlane.f32.xlu0 %v656
          %v658 = vpop.xlane.xlu0 %657
          %v659 = vsel %vm488, %v643, 0.0
          %660 = vadd.xlane.f32.xlu0 %v659
          %v661 = vpop.xlane.xlu0 %660
          %v662 = vsel %vm488, %v644, 0.0
          %663 = vadd.xlane.f32.xlu0 %v662
          %v664 = vpop.xlane.xlu0 %663
          %v665 = vsel %vm488, %v645, 0.0
          %666 = vadd.xlane.f32.xlu0 %v665
          %v667 = vpop.xlane.xlu0 %666
          %v668 = vsel %vm488, %v646, 0.0
          %669 = vadd.xlane.f32.xlu0 %v668
          %v670 = vpop.xlane.xlu0 %669
          %v671 = vadd.f32 %v649, %v416
          %v672 = vadd.f32 %v652, %v417
          %v673 = vadd.f32 %v655, %v418
          %v674 = vadd.f32 %v658, %v419
          %v675 = vadd.f32 %v661, %v420
          %v676 = vadd.f32 %v664, %v421
          %v677 = vadd.f32 %v667, %v422
          %v678 = vadd.f32 %v670, %v423
          %v679 = vadd.f32 %v548, %v671
          %v680 = vadd.f32 %v549, %v672
          %v681 = vadd.f32 %v550, %v673
          %v682 = vadd.f32 %v551, %v674
          %v683 = vadd.f32 %v552, %v675
          %v684 = vadd.f32 %v553, %v676
          %v685 = vadd.f32 %v554, %v677
          %v686 = vadd.f32 %v555, %v678
          %v687 = vxor.u32 %v679, 2147483648
          %v688 = vxor.u32 %v680, 2147483648
          %v689 = vxor.u32 %v681, 2147483648
          %v690 = vxor.u32 %v682, 2147483648
          %v691 = vxor.u32 %v683, 2147483648
          %v692 = vxor.u32 %v684, 2147483648
          %v693 = vxor.u32 %v685, 2147483648
          %v694 = vxor.u32 %v686, 2147483648
          %v695 = vmul.f32 %v687, 1.442695
          %v696 = vpow.pop %v695
          %v697 = vmul.f32 %v688, 1.442695
          %v698 = vpow.pop %v697
          %v699 = vmul.f32 %v689, 1.442695
          %v700 = vpow.pop %v699
          %v701 = vmul.f32 %v690, 1.442695
          %v702 = vpow.pop %v701
          %v703 = vmul.f32 %v691, 1.442695
          %v704 = vpow.pop %v703
          %v705 = vmul.f32 %v692, 1.442695
          %v706 = vpow.pop %v705
          %v707 = vmul.f32 %v693, 1.442695
          %v708 = vpow.pop %v707
          %v709 = vmul.f32 %v694, 1.442695
          %v710 = vpow.pop %v709
          %v711 = vadd.f32 %v696, 1.0
          %v712 = vadd.f32 %v698, 1.0
          %v713 = vadd.f32 %v700, 1.0
          %v714 = vadd.f32 %v702, 1.0
          %v715 = vadd.f32 %v704, 1.0
          %v716 = vadd.f32 %v706, 1.0
          %v717 = vadd.f32 %v708, 1.0
          %v718 = vadd.f32 %v710, 1.0
          %v719 = vrcp.pop %v711
          %v720 = vmul.f32 1.0, %v719
          %v721 = vrcp.pop %v712
          %v722 = vmul.f32 1.0, %v721
          %v723 = vrcp.pop %v713
          %v724 = vmul.f32 1.0, %v723
          %v725 = vrcp.pop %v714
          %v726 = vmul.f32 1.0, %v725
          %v727 = vrcp.pop %v715
          %v728 = vmul.f32 1.0, %v727
          %v729 = vrcp.pop %v716
          %v730 = vmul.f32 1.0, %v729
          %v731 = vrcp.pop %v717
          %v732 = vmul.f32 1.0, %v731
          %v733 = vrcp.pop %v718
          %v734 = vmul.f32 1.0, %v733
          %735 = vst.msk [vmem:[%s261] sm:$0xff] %vm339, %v720
          %736 = vst.msk [vmem:[%s261 + $0x8] sm:$0xff] %vm339, %v722
          %737 = vst.msk [vmem:[%s261 + $0x10] sm:$0xff] %vm339, %v724
          %738 = vst.msk [vmem:[%s261 + $0x18] sm:$0xff] %vm339, %v726
          %739 = vst.msk [vmem:[%s261 + $0x20] sm:$0xff] %vm339, %v728
          %740 = vst.msk [vmem:[%s261 + $0x28] sm:$0xff] %vm339, %v730
          %741 = vst.msk [vmem:[%s261 + $0x30] sm:$0xff] %vm339, %v732
          %742 = vst.msk [vmem:[%s261 + $0x38] sm:$0xff] %vm339, %v734
        $region52: #{tpu_custom_call.1} parent=39 // pred_fallthru
          _
        %p743 = scmp.lt.s32.totalorder %s23, 1
        %s744 = scalar_select %p743, %s23, 1
        %s745 = smul.addr %s744, 8
        %s746 = smul.addr %s745, 8
        %s747 = scalar_lea.vmem %s5, %s746
        // Predicated region
        $region53: #{tpu_custom_call.1} parent=39 // pred_check
          %p748 = pneg %p161
        $region54: #{tpu_custom_call.1} parent=39 // pred_check_branch
          %750 = sbr.rel (%p748) target = $region56
        $region55: #{tpu_custom_call.1} parent=39 // pred_region
          _
        $region56: #{tpu_custom_call.1} parent=39 // pred_fallthru
          _
      $region40: #{tpu_custom_call.1} parent=5 // pred_fallthru
        _
      %p751 = scmp.le.s32.totalorder 2, %s14
      // Predicated region
      $region57: #{tpu_custom_call.1} parent=5 // pred_check
        %p752 = pneg %p751
      $region58: #{tpu_custom_call.1} parent=5 // pred_check_branch
        %754 = sbr.rel (%p752) target = $region60
      $region59: #{tpu_custom_call.1} parent=5 // pred_region
        %s755 = ssub.s32 %s14, 2
        // Predicated region
        $region61: #{tpu_custom_call.1} parent=59 // pred_check
          %p756 = pneg %p167
        $region62: #{tpu_custom_call.1} parent=59 // pred_check_branch
          %758 = sbr.rel (%p756) target = $region64
        $region63: #{tpu_custom_call.1} parent=59 // pred_region
          %p759 = scmp.lt.s32.totalorder %s25, 1
          %s760 = scalar_select %p759, %s25, 1
          %s761 = smul.addr %s760, 8
          %s762 = smul.addr %s761, 8
          %s763 = scalar_lea.vmem %s5, %s762
        $region64: #{tpu_custom_call.1} parent=59 // pred_fallthru
          _
      $region60: #{tpu_custom_call.1} parent=5 // pred_fallthru
        _
    $region6: #{tpu_custom_call.1} parent=1 // loop_footer
      %s18 = sadd.s32 1, %s14
    $region7: #{tpu_custom_call.1} parent=1 // loop_footer_branch
      %13 = sbr.rel target = $region3
    $region8: #{tpu_custom_call.1} parent=1 // loop_exit
      _
    %764 = vsyncpa [#allocation5], 1
    %s765 = scalar_lea.sflag [#allocation5], 1
    %766 = vsyncpa %s765, 1

</llo_original>
